<compile_context>
chip_gen: v7x
topology: tpu7x:2x2x1
jax: 0.10.0
libtpu: 0.0.40
codegen_flags: <defaults>
</compile_context>

<pallas_src>
import jax
import jax.numpy as jnp
from jax.experimental import pallas as pl
from jax.experimental.pallas import tpu as pltpu

NUM_T = 16            # one-hot depth (number of diffusion timesteps in utils.one_hot)

_LANES = 128
_VMEM_BUDGET_BYTES = 24 * 1024 * 1024   # double-buffered block budget (of 32 MiB scoped)
_VMEM_LIMIT_BYTES = 32 * 1024 * 1024    # v6e/v7x default; raises v5e's 16 MiB default
_MIN_GRID_STEPS = 4                     # >= 2 steps per TensorCore on v7x (2 TCs/chip)


def _sublane_pack(dtype) -> int:
    # rows per packed sublane group: 8 for 4-byte, 16 for 2-byte, 32 for 1-byte dtypes
    itemsize = jnp.dtype(dtype).itemsize
    return max(8, 32 // max(itemsize, 1))


def _choose_batch_tile(B: int, D: int, out_w: int, x_dtype) -> int:
    """Pick the batch tile: as large as the VMEM budget allows, but keep
    >= _MIN_GRID_STEPS grid steps so both TensorCores get work on v7x."""
    pack = _sublane_pack(x_dtype)
    item = jnp.dtype(x_dtype).itemsize
    # Lane-padded, double-buffered VMEM bytes per row across the 3 operands.
    # The (tb, 1) int32 t block pads to 128 lanes — counted explicitly.
    row_bytes = 2 * (
        pl.cdiv(D, _LANES) * _LANES * item          # x block
        + pl.cdiv(out_w, _LANES) * _LANES * item    # out block
        + _LANES * 4                                # t block (int32)
    )
    tb_vmem = max(pack, (_VMEM_BUDGET_BYTES // row_bytes) // pack * pack)

    if B <= _MIN_GRID_STEPS * pack:
        return B  # tiny batch: single full-dim block (satisfies the (8,128) rule)

    tb_split = max(pack, (pl.cdiv(B, _MIN_GRID_STEPS) // pack) * pack)
    tb = min(tb_vmem, tb_split)
    return min(tb, B)


def _make_kernel(D: int, out_w: int):
    num_t = out_w - D

    def append_time_kernel(x_ref, t_ref, o_ref):
        tb = x_ref.shape[0]
        # One-hot encode t across NUM_T lanes: onehot[b, k] = (t[b] == k).
        # (Out-of-range t -> all-zero row, matching jax.nn.one_hot; torch's
        #  F.one_hot would raise instead — assumed consistent with utils.one_hot.)
        lane_ids = jax.lax.broadcasted_iota(jnp.int32, (tb, num_t), 1)
        t = t_ref[...].astype(jnp.int32)                 # (tb, 1), broadcasts over lanes
        onehot = (lane_ids == t).astype(o_ref.dtype)     # (tb, num_t)

        if D % _LANES == 0:
            # x store is already lane-aligned and unmasked: skip the extra
            # vreg copy a concat would build, store the two pieces directly.
            o_ref[:, :D] = x_ref[...]
            o_ref[:, D:] = onehot
        else:
            # out_w not a multiple of 128: assemble once and issue a single
            # (still masked, but single) store instead of two partial stores.
            o_ref[...] = jnp.concatenate([x_ref[...], onehot], axis=-1)

    return append_time_kernel


def append_time(x, t):
    """x: (B, D) float; t: (B,) or (B, 1) integer timesteps. Returns (B, D + NUM_T)."""
    B, D = x.shape
    t2d = jnp.reshape(t, (-1, 1)).astype(jnp.int32)   # t.view(-1, 1)
    out_w = D + NUM_T
    out_shape = jax.ShapeDtypeStruct((B, out_w), x.dtype)

    tb = _choose_batch_tile(B, D, out_w, x.dtype)
    grid = (pl.cdiv(B, tb),)

    item = jnp.dtype(x.dtype).itemsize
    bytes_accessed = B * D * item + B * 4 + B * out_w * item

    return pl.pallas_call(
        _make_kernel(D, out_w),
        out_shape=out_shape,
        grid=grid,
        in_specs=[
            pl.BlockSpec((tb, D), lambda i: (i, 0)),
            pl.BlockSpec((tb, 1), lambda i: (i, 0)),
        ],
        out_specs=pl.BlockSpec((tb, out_w), lambda i: (i, 0)),
        compiler_params=pltpu.CompilerParams(
            dimension_semantics=("parallel",),        # shard batch tiles across TCs (v7x)
            vmem_limit_bytes=_VMEM_LIMIT_BYTES,
        ),
        cost_estimate=pl.CostEstimate(
            flops=0, transcendentals=0, bytes_accessed=bytes_accessed
        ),
    )(x, t2d)


def _reference(x, t):
    return jnp.concatenate([x, jax.nn.one_hot(t, NUM_T, dtype=x.dtype)], axis=1)


if __name__ == "__main__":
    key = jax.random.PRNGKey(0)

    # 1) Small batch (single-step grid, full-dim blocks), shapes implied by the module.
    kx, kt = jax.random.split(key)
    B, D = 8, 32
    x = jax.random.normal(kx, (B, D), dtype=jnp.float32)
    t = jax.random.randint(kt, (B,), 0, NUM_T, dtype=jnp.int32)
    out = jax.block_until_ready(append_time(x, t))
    assert out.shape == (B, D + NUM_T)
    assert jnp.allclose(out, _reference(x, t)), "mismatch vs reference (small batch)"

    # 2) Larger batch: tiled path, >= 4 grid steps (both TCs on v7x).
    kx2, kt2 = jax.random.split(jax.random.PRNGKey(1))
    B2 = 4096
    x2 = jax.random.normal(kx2, (B2, D), dtype=jnp.float32)
    t2 = jax.random.randint(kt2, (B2,), 0, NUM_T, dtype=jnp.int32)
    out2 = jax.block_until_ready(append_time(x2, t2))
    assert jnp.allclose(out2, _reference(x2, t2)), "mismatch vs reference (tiled path)"

    # 3) Remainder path: B not a multiple of the tile or the sublane pack.
    kx3, kt3 = jax.random.split(jax.random.PRNGKey(2))
    B3 = 1003
    x3 = jax.random.normal(kx3, (B3, D), dtype=jnp.float32)
    t3 = jax.random.randint(kt3, (B3,), 0, NUM_T, dtype=jnp.int32)
    out3 = jax.block_until_ready(append_time(x3, t3))
    assert jnp.allclose(out3, _reference(x3, t3)), "mismatch vs reference (remainder path)"

    # 4) D a multiple of 128: exercises the two-store (no-concat) branch.
    kx4, kt4 = jax.random.split(jax.random.PRNGKey(3))
    B4, D4 = 64, 128
    x4 = jax.random.normal(kx4, (B4, D4), dtype=jnp.float32)
    t4 = jax.random.randint(kt4, (B4,), 0, NUM_T, dtype=jnp.int32)
    out4 = jax.block_until_ready(append_time(x4, t4))
    assert jnp.allclose(out4, _reference(x4, t4)), "mismatch vs reference (D % 128 == 0)"

    print("KERNEL_OK")
</pallas_src>

<mosaic_0001>
module attributes {stable_mosaic.version = 11 : i64} {
  func.func @append_time_kernel(%arg0: i32, %arg1: memref<8x32xf32, #tpu.memory_space<vmem>>, %arg2: memref<8x1xi32, #tpu.memory_space<vmem>>, %arg3: memref<8x48xf32, #tpu.memory_space<vmem>>) attributes {dimension_semantics = [#tpu.dimension_semantics<parallel>], iteration_bounds = array<i64: 1>, scalar_prefetch = 0 : i64, scratch_operands = 0 : i64, tpu.core_type = #tpu.core_type<tc>, window_params = [{transform_indices = @transform_0, window_bounds = array<i64: 8, 32>}, {transform_indices = @transform_1, window_bounds = array<i64: 8, 1>}, {transform_indices = @transform_2, window_bounds = array<i64: 8, 48>}]} {
    %0 = tpu.iota {dimensions = array<i32: 1>} : vector<8x16xi32>
    %c0 = arith.constant 0 : index
    %c0_0 = arith.constant 0 : index
    %1 = vector.load %arg2[%c0, %c0_0] : memref<8x1xi32, #tpu.memory_space<vmem>>, vector<8x1xi32>
    %2 = vector.broadcast %1 : vector<8x1xi32> to vector<8x16xi32>
    %3 = arith.cmpi eq, %0, %2 : vector<8x16xi32>
    %4 = arith.extui %3 : vector<8x16xi1> to vector<8x16xi32>
    %5 = arith.sitofp %4 : vector<8x16xi32> to vector<8x16xf32>
    %c0_1 = arith.constant 0 : index
    %c0_2 = arith.constant 0 : index
    %6 = vector.load %arg1[%c0_1, %c0_2] : memref<8x32xf32, #tpu.memory_space<vmem>>, vector<8x32xf32>
    %7 = tpu.concatenate %6, %5 in 1 : vector<8x32xf32>, vector<8x16xf32> -> vector<8x48xf32>
    %c0_3 = arith.constant 0 : index
    %c0_4 = arith.constant 0 : index
    %8 = vector.load %arg3[%c0_3, %c0_4] : memref<8x48xf32, #tpu.memory_space<vmem>>, vector<8x48xf32>
    tpu.vector_store %arg3[%c0_3, %c0_4], %7 {strides = array<i32>} : memref<8x48xf32, #tpu.memory_space<vmem>>, vector<8x48xf32>,
    return
  }
  func.func @transform_0(%arg0: i32) -> (i32, i32) {
    %c0_i32 = arith.constant 0 : i32
    %c0_i32_0 = arith.constant 0 : i32
    return %arg0, %c0_i32 : i32, i32
  }
  func.func @transform_1(%arg0: i32) -> (i32, i32) {
    %c0_i32 = arith.constant 0 : i32
    %c0_i32_0 = arith.constant 0 : i32
    return %arg0, %c0_i32 : i32, i32
  }
  func.func @transform_2(%arg0: i32) -> (i32, i32) {
    %c0_i32 = arith.constant 0 : i32
    %c0_i32_0 = arith.constant 0 : i32
    return %arg0, %c0_i32 : i32, i32
  }
}

</mosaic_0001>

<llo_original>
// kernel: tpu_custom_call.1
$region0: #{tpu_custom_call.1}
  #allocation0 [shape = 'u32[]', space=smem, size = 0x4, offset = 0x4, fixed_abs, tag = 'smem constant byte address 0x4 - core index']
  #allocation1 [shape = 'u32[144,128]{1,0:T(1,128)}', space=vmem, size = 0x12000, scoped, tag = 'internal scratch']
  %s0 = inlined_call_operand.vmem [shape: f32[8,32], index: 0, kind: input, shape index: {}]
  %s1 = inlined_call_operand.vmem [shape: s32[8,1], index: 1, kind: input, shape index: {}]
  %s2 = inlined_call_operand.hbm [shape: f32[8,48], index: 2, kind: output, shape index: {}]
  %s3 = sld [smem:[#allocation0]]
  $region18: #{tpu_custom_call.1} parent=0
    _
  %s5 = ssub.s32 1, %s3
  %s6 = scalar_select 0, %s5, %s3
  $region1: #{tpu_custom_call.1} parent=0
    #allocation2 [shape = 'u8[4096]{0}', space=vmem, size = 0x1000, scoped, tag = 'output window, operand 0, single buffered']
    #allocation3 [shape = 's32[1]{0}', space=sflag, size = 0x4, scoped, tag = 'scoped memory for tpu_custom_call.1']
    %7 = vsyncpa [#allocation3], 0
    // Predicated region
    $region2: #{tpu_custom_call.1} parent=1 // pred_check
      _
    $region3: #{tpu_custom_call.1} parent=1 // pred_check_branch
      %9 = sbr.rel (0) target = $region5
    $region4: #{tpu_custom_call.1} parent=1 // pred_region
      _
    $region5: #{tpu_custom_call.1} parent=1 // pred_fallthru
      _
    // Predicated region
    $region6: #{tpu_custom_call.1} parent=1 // pred_check
      _
    $region7: #{tpu_custom_call.1} parent=1 // pred_check_branch
      %11 = sbr.rel (0) target = $region9
    $region8: #{tpu_custom_call.1} parent=1 // pred_region
      _
    $region9: #{tpu_custom_call.1} parent=1 // pred_fallthru
      _
    %v12 = vlaneseq
    %v13 = vand.u32 %v12, 127
    %v14 = vld [vmem:[%s1] sm:$0xff]
    %15 = vset.pattern.permute.xlu0 0
    %16 = vperm.xlu0 %15, %v14
    %v17 = vpop.permute.xlu0 %16
    %vm18 = vcmp.eq.s32.totalorder %v13, %v17
    %v19 = vsel %vm18, 1, 0
    %v20 = vcvt.s32.f32 %v19
    %v21 = vld [vmem:[%s0] sm:$0xff]
    %23 = vrot.lane.b32.xlu0 %v20, 32
    %v24 = vpop.permute.xlu0 %23
    %vm26 = vcmask 261120
    %v27 = vsel %vm26, %v21, %v24
    %vm28 = vcmask 392192
    %29 = vst.msk [vmem:[#allocation2] sm:$0xff] %vm28, %v27
    // Predicated region
    $region10: #{tpu_custom_call.1} parent=1 // pred_check
      _
    $region11: #{tpu_custom_call.1} parent=1 // pred_check_branch
      %31 = sbr.rel (0) target = $region13
    $region12: #{tpu_custom_call.1} parent=1 // pred_region
      %s33 = ssub.s32 128, 128
      %34 = vsyncadd [#allocation3], %s33
      %s36 = sshll.u32 [#allocation2], 4
      %s37 = int_to_ptr.vmem [resolvable:$true] %s36
      %39 = dma.vmem_to_hbm [thread:$0]  %s37, 128, %s2, [#allocation3]
    $region13: #{tpu_custom_call.1} parent=1 // pred_fallthru
      _
    // Predicated region
    $region14: #{tpu_custom_call.1} parent=1 // pred_check
      _
    $region15: #{tpu_custom_call.1} parent=1 // pred_check_branch
      %41 = sbr.rel (0) target = $region17
    $region16: #{tpu_custom_call.1} parent=1 // pred_region
      %42 = dma.done [#allocation3], 128
    $region17: #{tpu_custom_call.1} parent=1 // pred_fallthru
      _
    %43 = vsyncpa [#allocation3], 1

</llo_original>
